<compile_context>
chip_gen: v5e
topology: v5e:2x2
jax: 0.10.0
libtpu: 0.0.40
codegen_flags: <defaults>
</compile_context>

<pallas_src>
import jax
import jax.numpy as jnp
from jax import lax
from jax.experimental import pallas as pl
from jax.experimental.pallas import tpu as pltpu

_LANES = 128
_CHUNK_ROWS = 512                     # 512*128*4B = 256 KiB f32 temporaries
_TARGET_TILE_BYTES = 4 * 1024 * 1024  # per-input DMA tile in the stored dtype


def _cdiv(a, b):
    return -(-a // b)


def _round_up(a, b):
    return _cdiv(a, b) * b


def _make_kernel(rows, tile_rows, chunk_rows, n_tiles, tiles_per_split, n_split):
    tail_rows = rows - (n_tiles - 1) * tile_rows
    n_full = n_tiles if tail_rows == tile_rows else n_tiles - 1
    no_partial = (tail_rows == tile_rows) and (n_split * tiles_per_split == n_tiles)

    n_even = tile_rows // chunk_rows            # uniform chunks per tile (>= 1)
    rem_rows = tile_rows - n_even * chunk_rows  # static ragged last chunk

    def kernel(ori_ref, model_ref, out_ref):
        s = pl.program_id(1)
        t = pl.program_id(2)
        gt = s * tiles_per_split + t            # global tile index

        @pl.when(t == 0)
        def _init():
            out_ref[...] = jnp.zeros_like(out_ref)

        def chunk_sum(start, size, valid_rows):
            # start: static int or traced int32 multiple of chunk_rows.
            if not isinstance(start, int):
                start = pl.multiple_of(start, chunk_rows)
            o = ori_ref[0, pl.ds(start, size), :].astype(jnp.float32)
            m = model_ref[0, pl.ds(start, size), :].astype(jnp.float32)
            d = m - jnp.tanh(o)
            sq = d * d
            if valid_rows is not None:
                rid = lax.broadcasted_iota(jnp.int32, (size, _LANES), 0) + start
                sq = jnp.where(rid < valid_rows, sq, 0.0)   # select: garbage never leaks
            return jnp.sum(sq, axis=0, keepdims=True)       # (1, 128) f32

        def tile_sum(valid_rows):
            acc = jnp.zeros((1, _LANES), jnp.float32)
            if n_even == 1:
                acc = acc + chunk_sum(0, chunk_rows, valid_rows)
            elif n_even > 1:
                acc = lax.fori_loop(
                    0, n_even,
                    lambda c, a: a + chunk_sum(c * chunk_rows, chunk_rows, valid_rows),
                    acc)
            if rem_rows:
                acc = acc + chunk_sum(n_even * chunk_rows, rem_rows, valid_rows)
            return acc

        if no_partial:
            out_ref[0, 0] += tile_sum(None)
        else:
            @pl.when(gt < n_full)
            def _full_tile():
                out_ref[0, 0] += tile_sum(None)

            @pl.when(gt >= n_full)
            def _tail_tile():                   # partial tail / overshoot (adds 0)
                out_ref[0, 0] += tile_sum(rows - gt * tile_rows)

    return kernel


def reconstruction_loss(ori_embeds, model_embeds, embed_l):
    assert ori_embeds.shape == model_embeds.shape
    B, S, D = ori_embeds.shape
    N = S * D

    if N % _LANES == 0:
        rows = N // _LANES

        def prep(x):                  # free contiguous reshape, no copy, no upcast
            return x.reshape(B, rows, _LANES)
    else:
        # TODO(synk): rare ragged case (S*D % 128 != 0) still pays one padding
        # copy; could be folded into the kernel with flat-element masking.
        rows = _cdiv(N, _LANES)
        pad = rows * _LANES - N

        def prep(x):
            return jnp.pad(x.reshape(B, N), ((0, 0), (0, pad))).reshape(B, rows, _LANES)

    ori = prep(ori_embeds)
    model = prep(model_embeds)

    itemsize = max(ori.dtype.itemsize, model.dtype.itemsize)
    target_rows = max(_CHUNK_ROWS, _TARGET_TILE_BYTES // (_LANES * itemsize))

    if rows <= target_rows:
        tile_rows = rows                        # single tile per batch row
    else:                                       # balanced, chunk-aligned tiles
        n0 = _cdiv(rows, target_rows)
        tile_rows = min(_round_up(_cdiv(rows, n0), _CHUNK_ROWS),
                        (rows // _CHUNK_ROWS) * _CHUNK_ROWS)
    chunk_rows = min(_CHUNK_ROWS, tile_rows)
    n_tiles = _cdiv(rows, tile_rows)

    # Explicit 2-way split of the tile axis so both v7x TensorCores get
    # "parallel" work even when B == 1.
    n_split = 2 if n_tiles >= 2 else 1
    tiles_per_split = _cdiv(n_tiles, n_split)

    if n_split * tiles_per_split == n_tiles:
        def in_map(b, s, t):
            return (b, s * tiles_per_split + t, 0)
    else:                                       # clamp the single overshoot step
        def in_map(b, s, t):
            return (b, jnp.minimum(s * tiles_per_split + t, n_tiles - 1), 0)

    kernel = _make_kernel(rows, tile_rows, chunk_rows, n_tiles, tiles_per_split, n_split)

    partial = pl.pallas_call(
        kernel,
        out_shape=jax.ShapeDtypeStruct((B, n_split, 1, _LANES), jnp.float32),
        grid_spec=pltpu.PrefetchScalarGridSpec(
            num_scalar_prefetch=0,
            grid=(B, n_split, tiles_per_split),
            in_specs=[
                pl.BlockSpec((1, tile_rows, _LANES), in_map),
                pl.BlockSpec((1, tile_rows, _LANES), in_map),
            ],
            out_specs=pl.BlockSpec((1, 1, 1, _LANES), lambda b, s, t: (b, s, 0, 0)),
        ),
        compiler_params=pltpu.CompilerParams(
            dimension_semantics=("parallel", "parallel", "arbitrary"),
            vmem_limit_bytes=32 * 1024 * 1024,
        ),
        cost_estimate=pl.CostEstimate(
            flops=3 * B * rows * _LANES,
            transcendentals=B * rows * _LANES,
            bytes_accessed=B * rows * _LANES
            * (ori.dtype.itemsize + model.dtype.itemsize)
            + B * n_split * _LANES * 4,
        ),
    )(ori, model)

    # Tiny wrapper-side finalization (a few scalars of XLA work).
    per_batch = jnp.sum(partial, axis=(1, 2, 3))            # (B,)
    return jnp.mean(per_batch / embed_l.astype(jnp.float32))


def _reference(ori_embeds, model_embeds, embed_l):
    temp = jnp.sum((model_embeds - jnp.tanh(ori_embeds)) ** 2, axis=2)
    lrec = jnp.sum(temp, axis=1) / embed_l
    return jnp.mean(lrec)


if __name__ == "__main__":
    keys = jax.random.split(jax.random.PRNGKey(0), 6)

    # Small shape consistent with the module (hits the single-tile fast path).
    B, S, D = 2, 8, 32
    ori = jax.random.normal(keys[0], (B, S, D), dtype=jnp.float32)
    model = jax.random.normal(keys[1], (B, S, D), dtype=jnp.float32)
    embed_l = jax.random.uniform(keys[2], (B,), dtype=jnp.float32,
                                 minval=4.0, maxval=float(S))

    loss = reconstruction_loss(ori, model, embed_l)
    jax.block_until_ready(loss)
    ref = _reference(ori, model, embed_l)
    assert abs(float(loss) - float(ref)) <= 1e-4 * max(1.0, abs(float(ref))), (
        float(loss), float(ref))

    # Larger shape exercising the tiled / chunked / masked-tail / core-split path.
    B2, S2, D2 = 1, 520, 2048
    ori2 = jax.random.normal(keys[3], (B2, S2, D2), dtype=jnp.float32)
    model2 = jax.random.normal(keys[4], (B2, S2, D2), dtype=jnp.float32)
    embed_l2 = jax.random.uniform(keys[5], (B2,), dtype=jnp.float32,
                                  minval=4.0, maxval=float(S2))

    loss2 = reconstruction_loss(ori2, model2, embed_l2)
    jax.block_until_ready(loss2)
    ref2 = _reference(ori2, model2, embed_l2)
    assert abs(float(loss2) - float(ref2)) <= 2e-3 * max(1.0, abs(float(ref2))), (
        float(loss2), float(ref2))

    print("KERNEL_OK")
</pallas_src>

<mosaic_0001>
module attributes {stable_mosaic.version = 11 : i64} {
  func.func @kernel(%arg0: i32, %arg1: i32, %arg2: i32, %arg3: memref<1x2x128xf32, #tpu.memory_space<vmem>>, %arg4: memref<1x2x128xf32, #tpu.memory_space<vmem>>, %arg5: memref<1x1x1x128xf32, #tpu.memory_space<vmem>>) attributes {dimension_semantics = [#tpu.dimension_semantics<parallel>, #tpu.dimension_semantics<parallel>, #tpu.dimension_semantics<arbitrary>], iteration_bounds = array<i64: 2, 1, 1>, scalar_prefetch = 0 : i64, scratch_operands = 0 : i64, tpu.core_type = #tpu.core_type<tc>, window_params = [{transform_indices = @transform_0, window_bounds = array<i64: 1, 2, 128>}, {transform_indices = @transform_1, window_bounds = array<i64: 1, 2, 128>}, {transform_indices = @transform_2, window_bounds = array<i64: 1, 1, 1, 128>}]} {
    %c0_i32 = arith.constant 0 : i32
    %0 = arith.cmpi eq, %arg2, %c0_i32 : i32
    %1 = arith.extui %0 : i1 to i32
    %c0_i32_0 = arith.constant 0 : i32
    %2 = arith.cmpi ne, %1, %c0_i32_0 : i32
    scf.if %2 {
      %cst_15 = arith.constant 0.000000e+00 : f32
      %20 = vector.broadcast %cst_15 : f32 to vector<1x1x1x128xf32>
      %c0_16 = arith.constant 0 : index
      %c0_17 = arith.constant 0 : index
      %c0_18 = arith.constant 0 : index
      %c0_19 = arith.constant 0 : index
      %21 = vector.load %arg5[%c0_16, %c0_17, %c0_18, %c0_19] : memref<1x1x1x128xf32, #tpu.memory_space<vmem>>, vector<1x1x1x128xf32>
      tpu.vector_store %arg5[%c0_16, %c0_17, %c0_18, %c0_19], %20 {strides = array<i32>} : memref<1x1x1x128xf32, #tpu.memory_space<vmem>>, vector<1x1x1x128xf32>,
    } else {
    }
    %c0 = arith.constant 0 : index
    %c0_1 = arith.constant 0 : index
    %c0_2 = arith.constant 0 : index
    %c0_3 = arith.constant 0 : index
    %3 = vector.load %arg5[%c0, %c0_1, %c0_2, %c0_3] : memref<1x1x1x128xf32, #tpu.memory_space<vmem>>, vector<1x1x1x128xf32>
    %4 = vector.shape_cast %3 : vector<1x1x1x128xf32> to vector<1x128xf32>
    %cst = arith.constant 0.000000e+00 : f32
    %5 = vector.broadcast %cst : f32 to vector<1x128xf32>
    %c0_4 = arith.constant 0 : index
    %c0_5 = arith.constant 0 : index
    %c0_6 = arith.constant 0 : index
    %6 = vector.load %arg3[%c0_4, %c0_5, %c0_6] : memref<1x2x128xf32, #tpu.memory_space<vmem>>, vector<1x2x128xf32>
    %7 = vector.shape_cast %6 : vector<1x2x128xf32> to vector<2x128xf32>
    %c0_7 = arith.constant 0 : index
    %c0_8 = arith.constant 0 : index
    %c0_9 = arith.constant 0 : index
    %8 = vector.load %arg4[%c0_7, %c0_8, %c0_9] : memref<1x2x128xf32, #tpu.memory_space<vmem>>, vector<1x2x128xf32>
    %9 = vector.shape_cast %8 : vector<1x2x128xf32> to vector<2x128xf32>
    %10 = math.tanh %7 : vector<2x128xf32>
    %11 = arith.subf %9, %10 : vector<2x128xf32>
    %12 = arith.mulf %11, %11 : vector<2x128xf32>
    %cst_10 = arith.constant dense<0.000000e+00> : vector<128xf32>
    %13 = vector.multi_reduction <add>, %12, %cst_10 [0] : vector<2x128xf32> to vector<128xf32>
    %14 = vector.shape_cast %13 : vector<128xf32> to vector<1x128xf32>
    %15 = arith.addf %5, %14 : vector<1x128xf32>
    %16 = arith.addf %4, %15 : vector<1x128xf32>
    %c0_11 = arith.constant 0 : index
    %c0_12 = arith.constant 0 : index
    %c0_13 = arith.constant 0 : index
    %c0_14 = arith.constant 0 : index
    %17 = vector.load %arg5[%c0_11, %c0_12, %c0_13, %c0_14] : memref<1x1x1x128xf32, #tpu.memory_space<vmem>>, vector<1x1x1x128xf32>
    %18 = vector.shape_cast %17 : vector<1x1x1x128xf32> to vector<1x128xf32>
    %19 = vector.shape_cast %16 : vector<1x128xf32> to vector<1x1x1x128xf32>
    tpu.vector_store %arg5[%c0_11, %c0_12, %c0_13, %c0_14], %19 {strides = array<i32>} : memref<1x1x1x128xf32, #tpu.memory_space<vmem>>, vector<1x1x1x128xf32>,
    return
  }
  func.func @transform_0(%arg0: i32, %arg1: i32, %arg2: i32) -> (i32, i32, i32) {
    %c1_i32 = arith.constant 1 : i32
    %0 = arith.muli %arg1, %c1_i32 : i32
    %1 = arith.addi %0, %arg2 : i32
    %c0_i32 = arith.constant 0 : i32
    %c0_i32_0 = arith.constant 0 : i32
    return %arg0, %1, %c0_i32 : i32, i32, i32
  }
  func.func @transform_1(%arg0: i32, %arg1: i32, %arg2: i32) -> (i32, i32, i32) {
    %c1_i32 = arith.constant 1 : i32
    %0 = arith.muli %arg1, %c1_i32 : i32
    %1 = arith.addi %0, %arg2 : i32
    %c0_i32 = arith.constant 0 : i32
    %c0_i32_0 = arith.constant 0 : i32
    return %arg0, %1, %c0_i32 : i32, i32, i32
  }
  func.func @transform_2(%arg0: i32, %arg1: i32, %arg2: i32) -> (i32, i32, i32, i32) {
    %c0_i32 = arith.constant 0 : i32
    %c0_i32_0 = arith.constant 0 : i32
    %c0_i32_1 = arith.constant 0 : i32
    return %arg0, %arg1, %c0_i32, %c0_i32_0 : i32, i32, i32, i32
  }
}

</mosaic_0001>

<llo_original>
// kernel: tpu_custom_call.1
$region0: #{tpu_custom_call.1}
  #allocation0 [shape = 'u32[]', space=smem, size = 0x4, offset = 0x4, fixed_abs, tag = 'smem constant byte address 0x4 - core index']
  #allocation1 [shape = 'u32[72,128]{1,0:T(1,128)}', space=vmem, size = 0x9000, scoped, tag = 'internal scratch']
  %s0 = inlined_call_operand.hbm [shape: f32[2,2,128], index: 0, kind: input, shape index: {}]
  %s1 = inlined_call_operand.hbm [shape: f32[2,2,128], index: 1, kind: input, shape index: {}]
  %s2 = inlined_call_operand.hbm [shape: f32[2,1,1,128], index: 2, kind: output, shape index: {}]
  %s3 = sld [smem:[#allocation0]]
  $region53: #{tpu_custom_call.1} parent=0
    _
  %s5 = ssub.s32 1, %s3
  %s6 = scalar_select 0, %s5, %s3
  $region1: #{tpu_custom_call.1} parent=0
    #allocation2 [shape = 'u8[2048]{0}', space=vmem, size = 0x800, scoped, tag = 'input window, operand 0']
    #allocation3 [shape = 's32[2]{0}', space=sflag, size = 0x8, scoped, tag = 'scoped memory for tpu_custom_call.1']
    #allocation4 [shape = 's32[2]{0}', space=sflag, size = 0x8, scoped, tag = 'scoped memory for tpu_custom_call.1']
    #allocation5 [shape = 'u8[2048]{0}', space=vmem, size = 0x800, scoped, tag = 'input window, operand 1']
    #allocation6 [shape = 's32[2]{0}', space=sflag, size = 0x8, scoped, tag = 'scoped memory for tpu_custom_call.1']
    #allocation7 [shape = 'u8[1024]{0}', space=vmem, size = 0x400, scoped, tag = 'output window, operand 0']
    %7 = vsyncpa [#allocation3], 0
    %s8 = scalar_lea.sflag [#allocation3], 1
    %9 = vsyncpa %s8, 0
    %10 = vsyncpa [#allocation6], 0
    %s11 = scalar_lea.sflag [#allocation6], 1
    %12 = vsyncpa %s11, 0
    %13 = vsyncpa [#allocation4], 0
    %s14 = scalar_lea.sflag [#allocation4], 1
    %15 = vsyncpa %s14, 0
    loop: start=0, step=1, limit=4
    $region2: #{tpu_custom_call.1} parent=1 // loop_pre_header
      _
    $region3: #{tpu_custom_call.1} parent=1 // loop_header
      %s17 = sphi 0, %s21
      %p18 = scmp.ge.s32.totalorder %s17, 4
      %s24 = sphi 0, %s43
      %s25 = sphi 0, %s39
      %s26 = sphi 0, %s35
      %s27 = sphi 0, %s24
      %s28 = sphi 0, %s25
      %s29 = sphi 0, %s26
      %s30 = sphi 0, %s27
      %s31 = sphi 0, %s28
      %s32 = sphi 0, %s29
      %s50 = sphi 0, %s52
      %s53 = sphi 0, %s50
      %s54 = sphi 0, %s53
      %s70 = sphi 0, %s54
      %s80 = sphi 0, %s82
      %s83 = sphi 0, %s80
      %s84 = sphi 0, %s83
      %s100 = sphi 0, %s84
      %s108 = sphi 0, %s110
      %s111 = sphi 0, %s108
      %s112 = sphi 0, %s111
      %s128 = sphi 0, %s112
    $region4: #{tpu_custom_call.1} parent=1 // loop_header_branch
      %20 = sbr.rel (%p18) target = $region8
    $region5: #{tpu_custom_call.1} parent=1 // loop_body
      %s22 = ssub.s32 %s17, 1
      %s23 = ssub.s32 %s17, 2
      %s33 = sadd.s32 1, %s26
      %p34 = scmp.ge.s32.totalorder %s33, 1
      %s35 = scalar_select %p34, 0, %s33
      %s36 = sadd.s32 1, %s25
      %s37 = scalar_select %p34, %s36, %s25
      %p38 = scmp.ge.s32.totalorder %s37, 1
      %s39 = scalar_select %p38, 0, %s37
      %s40 = sadd.s32 1, %s24
      %s41 = scalar_select %p38, %s40, %s24
      %p42 = scmp.ge.s32.totalorder %s41, 2
      %s43 = scalar_select %p42, 0, %s41
      %s44 = sadd.s32 %s25, %s26
      %s45 = sadd.s32 %s39, %s35
      %s46 = ssub.s32 %s24, %s43
      %s47 = ssub.s32 %s44, %s45
      %s48 = sor.u32 %s46, %s47
      %p49 = scmp.eq.s32.totalorder %s48, 0
      %s51 = sadd.s32 %s50, 1
      %s52 = scalar_select %p49, %s50, %s51
      %p55 = pneg %p49
      %p56 = scmp.eq.s32.totalorder %s17, 1
      %p57 = por %p55, %p56
      %p58 = scmp.ne.s32.totalorder %s50, %s53
      %p59 = scmp.eq.s32.totalorder %s17, 0
      %p60 = por %p58, %p59
      %p61 = scmp.ne.s32.totalorder %s50, %s53
      %p62 = scmp.eq.s32.totalorder %s22, 1
      %p63 = por %p61, %p62
      %p64 = scmp.ne.s32.totalorder %s53, %s54
      %p65 = scmp.eq.s32.totalorder %s22, 0
      %p66 = por %p64, %p65
      %p67 = scmp.ne.s32.totalorder %s53, %s54
      %p68 = scmp.eq.s32.totalorder %s23, 1
      %p69 = por %p67, %p68
      %p71 = scmp.ne.s32.totalorder %s54, %s70
      %p72 = scmp.eq.s32.totalorder %s23, 0
      %p73 = por %p71, %p72
      %s74 = sadd.s32 %s25, %s26
      %s75 = sadd.s32 %s39, %s35
      %s76 = ssub.s32 %s24, %s43
      %s77 = ssub.s32 %s74, %s75
      %s78 = sor.u32 %s76, %s77
      %p79 = scmp.eq.s32.totalorder %s78, 0
      %s81 = sadd.s32 %s80, 1
      %s82 = scalar_select %p79, %s80, %s81
      %p85 = pneg %p79
      %p86 = scmp.eq.s32.totalorder %s17, 1
      %p87 = por %p85, %p86
      %p88 = scmp.ne.s32.totalorder %s80, %s83
      %p89 = scmp.eq.s32.totalorder %s17, 0
      %p90 = por %p88, %p89
      %p91 = scmp.ne.s32.totalorder %s80, %s83
      %p92 = scmp.eq.s32.totalorder %s22, 1
      %p93 = por %p91, %p92
      %p94 = scmp.ne.s32.totalorder %s83, %s84
      %p95 = scmp.eq.s32.totalorder %s22, 0
      %p96 = por %p94, %p95
      %p97 = scmp.ne.s32.totalorder %s83, %s84
      %p98 = scmp.eq.s32.totalorder %s23, 1
      %p99 = por %p97, %p98
      %p101 = scmp.ne.s32.totalorder %s84, %s100
      %p102 = scmp.eq.s32.totalorder %s23, 0
      %p103 = por %p101, %p102
      %s104 = ssub.s32 %s24, %s43
      %s105 = ssub.s32 %s25, %s39
      %s106 = sor.u32 %s104, %s105
      %p107 = scmp.eq.s32.totalorder %s106, 0
      %s109 = sadd.s32 %s108, 1
      %s110 = scalar_select %p107, %s108, %s109
      %p113 = pneg %p107
      %p114 = scmp.eq.s32.totalorder %s17, 1
      %p115 = por %p113, %p114
      %p116 = scmp.ne.s32.totalorder %s108, %s111
      %p117 = scmp.eq.s32.totalorder %s17, 0
      %p118 = por %p116, %p117
      %p119 = scmp.ne.s32.totalorder %s108, %s111
      %p120 = scmp.eq.s32.totalorder %s22, 1
      %p121 = por %p119, %p120
      %p122 = scmp.ne.s32.totalorder %s111, %s112
      %p123 = scmp.eq.s32.totalorder %s22, 0
      %p124 = por %p122, %p123
      %p125 = scmp.ne.s32.totalorder %s111, %s112
      %p126 = scmp.eq.s32.totalorder %s23, 1
      %p127 = por %p125, %p126
      %p129 = scmp.ne.s32.totalorder %s112, %s128
      %p130 = scmp.eq.s32.totalorder %s23, 0
      %p131 = por %p129, %p130
      %p132 = scmp.le.s32.totalorder 1, %s17
      %p133 = scmp.lt.s32.totalorder %s17, 3
      %p134 = pnand %p132, %p133
      %p135 = pneg %p134
      // Predicated region
      $region9: #{tpu_custom_call.1} parent=5 // pred_check
        _
      $region10: #{tpu_custom_call.1} parent=5 // pred_check_branch
        %137 = sbr.rel (%p134) target = $region12
      $region11: #{tpu_custom_call.1} parent=5 // pred_region
        %s138 = ssub.s32 %s17, 1
      $region12: #{tpu_custom_call.1} parent=5 // pred_fallthru
        _
      %p139 = scmp.lt.s32.totalorder %s17, 2
      // Predicated region
      $region13: #{tpu_custom_call.1} parent=5 // pred_check
        %p140 = pneg %p139
      $region14: #{tpu_custom_call.1} parent=5 // pred_check_branch
        %142 = sbr.rel (%p140) target = $region16
      $region15: #{tpu_custom_call.1} parent=5 // pred_region
        // Predicated region
        $region17: #{tpu_custom_call.1} parent=15 // pred_check
          %p143 = pneg %p60
        $region18: #{tpu_custom_call.1} parent=15 // pred_check_branch
          %145 = sbr.rel (%p143) target = $region20
        $region19: #{tpu_custom_call.1} parent=15 // pred_region
          %s146 = sand.u32 %s50, 1
          %s147 = scalar_lea.sflag [#allocation3], %s146
          %s148 = sand.u32 %s50, 1
          %s149 = smul.addr %s148, 2
          %s150 = scalar_lea.vmem [#allocation2], %s149
          %s151 = sadd.s32 %s25, %s26
          %153 = vsyncadd %s147, 0
          %s154 = sadd.s32 %s151, %s24
          %s155 = smul.addr %s154, 2
          %s156 = scalar_lea.hbm %s0, %s155
          %s158 = sshll.u32 %s156, 4
          %s159 = int_to_ptr.hbm [resolvable:$true] %s158
          %s160 = sshll.u32 %s150, 4
          %s161 = int_to_ptr.vmem [resolvable:$true] %s160
          %163 = dma.hbm_to_vmem [thread:$0]  %s159, 32, %s161, %s147
        $region20: #{tpu_custom_call.1} parent=15 // pred_fallthru
          _
        // Predicated region
        $region21: #{tpu_custom_call.1} parent=15 // pred_check
          %p164 = pneg %p90
        $region22: #{tpu_custom_call.1} parent=15 // pred_check_branch
          %166 = sbr.rel (%p164) target = $region24
        $region23: #{tpu_custom_call.1} parent=15 // pred_region
          %s167 = sand.u32 %s80, 1
          %s168 = scalar_lea.sflag [#allocation6], %s167
          %s169 = sand.u32 %s80, 1
          %s170 = smul.addr %s169, 2
          %s171 = scalar_lea.vmem [#allocation5], %s170
          %s172 = sadd.s32 %s25, %s26
          %174 = vsyncadd %s168, 0
          %s175 = sadd.s32 %s172, %s24
          %s176 = smul.addr %s175, 2
          %s177 = scalar_lea.hbm %s1, %s176
          %s179 = sshll.u32 %s177, 4
          %s180 = int_to_ptr.hbm [resolvable:$true] %s179
          %s181 = sshll.u32 %s171, 4
          %s182 = int_to_ptr.vmem [resolvable:$true] %s181
          %184 = dma.hbm_to_vmem [thread:$0]  %s180, 32, %s182, %s168
        $region24: #{tpu_custom_call.1} parent=15 // pred_fallthru
          _
      $region16: #{tpu_custom_call.1} parent=5 // pred_fallthru
        _
      %p185 = scmp.le.s32.totalorder 1, %s17
      %p186 = scmp.lt.s32.totalorder %s17, 3
      %p187 = pnand %p185, %p186
      %p188 = pneg %p187
      // Predicated region
      $region25: #{tpu_custom_call.1} parent=5 // pred_check
        _
      $region26: #{tpu_custom_call.1} parent=5 // pred_check_branch
        %190 = sbr.rel (%p187) target = $region28
      $region27: #{tpu_custom_call.1} parent=5 // pred_region
        %s191 = ssub.s32 %s17, 1
        %s192 = sand.u32 %s53, 1
        %s193 = scalar_lea.sflag [#allocation3], %s192
        %s194 = sand.u32 %s53, 1
        %s195 = smul.addr %s194, 2
        %s196 = scalar_lea.vmem [#allocation2], %s195
        // Predicated region
        $region29: #{tpu_custom_call.1} parent=27 // pred_check
          %p197 = pneg %p66
        $region30: #{tpu_custom_call.1} parent=27 // pred_check_branch
          %199 = sbr.rel (%p197) target = $region32
        $region31: #{tpu_custom_call.1} parent=27 // pred_region
          %201 = dma.done %s193, 32
        $region32: #{tpu_custom_call.1} parent=27 // pred_fallthru
          _
        %s202 = sand.u32 %s83, 1
        %s203 = scalar_lea.sflag [#allocation6], %s202
        %s204 = sand.u32 %s83, 1
        %s205 = smul.addr %s204, 2
        %s206 = scalar_lea.vmem [#allocation5], %s205
        // Predicated region
        $region33: #{tpu_custom_call.1} parent=27 // pred_check
          %p207 = pneg %p96
        $region34: #{tpu_custom_call.1} parent=27 // pred_check_branch
          %209 = sbr.rel (%p207) target = $region36
        $region35: #{tpu_custom_call.1} parent=27 // pred_region
          %211 = dma.done %s203, 32
        $region36: #{tpu_custom_call.1} parent=27 // pred_fallthru
          _
        %s212 = sand.u32 %s53, 1
        %s213 = scalar_lea.sflag [#allocation3], %s212
        %s214 = sand.u32 %s53, 1
        %s215 = smul.addr %s214, 2
        %s216 = scalar_lea.vmem [#allocation2], %s215
        %p217 = pneg %p66
        %p218 = pneg %p63
        %s219 = sand.u32 %s83, 1
        %s220 = scalar_lea.sflag [#allocation6], %s219
        %s221 = sand.u32 %s83, 1
        %s222 = smul.addr %s221, 2
        %s223 = scalar_lea.vmem [#allocation5], %s222
        %p224 = pneg %p96
        %p225 = pneg %p93
        %p226 = pneg %p124
        %p227 = pneg %p121
        %s228 = sand.u32 %s111, 1
        %s229 = scalar_lea.sflag [#allocation4], %s228
        %s230 = sand.u32 %s111, 1
        %s231 = scalar_lea.vmem [#allocation7], %s230
        %s232 = sadd.s32 %s28, %s29
        %s233 = sadd.s32 %s28, %s29
        %p234 = scmp.eq.s32.totalorder %s29, 0
        // Predicated region
        $region37: #{tpu_custom_call.1} parent=27 // pred_check
          %p235 = pneg %p234
        $region38: #{tpu_custom_call.1} parent=27 // pred_check_branch
          %237 = sbr.rel (%p235) target = $region40
        $region39: #{tpu_custom_call.1} parent=27 // pred_region
          %238 = vst [vmem:[%s231] sm:$0x1] 0.0
        $region40: #{tpu_custom_call.1} parent=27 // pred_fallthru
          _
        %v239 = vld [vmem:[%s231] sm:$0x1]
        %v240 = vld [vmem:[%s196] sm:$0x3]
        %v241 = vld [vmem:[%s206] sm:$0x3]
        %v242 = vtanh.pop %v240
        %v243 = vsub.f32 %v241, %v242
        %v244 = vmul.f32 %v243, %v243
        %vm245 = vcmask 1041408
        %v246 = vsel %vm245, %v244, 0.0
        %v247 = vrot.slane %v246, 4
        %v248 = vadd.f32 %v246, %v247
        %v249 = vrot.slane %v248, 2
        %v250 = vadd.f32 %v248, %v249
        %v251 = vrot.slane %v250, 1
        %v252 = vadd.f32 %v250, %v251
        %v253 = vadd.f32 %v252, 0.0
        %v254 = vadd.f32 %v239, %v253
        %255 = vst [vmem:[%s231] sm:$0x1] %v254
        %s256 = sand.u32 %s111, 1
        %s257 = scalar_lea.sflag [#allocation4], %s256
        %s258 = sand.u32 %s111, 1
        %s259 = scalar_lea.vmem [#allocation7], %s258
        // Predicated region
        $region41: #{tpu_custom_call.1} parent=27 // pred_check
          %p260 = pneg %p121
        $region42: #{tpu_custom_call.1} parent=27 // pred_check_branch
          %262 = sbr.rel (%p260) target = $region44
        $region43: #{tpu_custom_call.1} parent=27 // pred_region
          %264 = vsyncadd %s257, 0
          %s265 = sadd.s32 %s28, %s27
          %s266 = scalar_lea.hbm %s2, %s265
          %s268 = sshll.u32 %s259, 4
          %s269 = int_to_ptr.vmem [resolvable:$true] %s268
          %s270 = sshll.u32 %s266, 4
          %s271 = int_to_ptr.hbm [resolvable:$true] %s270
          %273 = dma.vmem_to_hbm [thread:$0]  %s269, 16, %s271, %s257
        $region44: #{tpu_custom_call.1} parent=27 // pred_fallthru
          _
      $region28: #{tpu_custom_call.1} parent=5 // pred_fallthru
        _
      %p274 = scmp.le.s32.totalorder 2, %s17
      // Predicated region
      $region45: #{tpu_custom_call.1} parent=5 // pred_check
        %p275 = pneg %p274
      $region46: #{tpu_custom_call.1} parent=5 // pred_check_branch
        %277 = sbr.rel (%p275) target = $region48
      $region47: #{tpu_custom_call.1} parent=5 // pred_region
        %s278 = ssub.s32 %s17, 2
        // Predicated region
        $region49: #{tpu_custom_call.1} parent=47 // pred_check
          %p279 = pneg %p127
        $region50: #{tpu_custom_call.1} parent=47 // pred_check_branch
          %281 = sbr.rel (%p279) target = $region52
        $region51: #{tpu_custom_call.1} parent=47 // pred_region
          %s282 = sand.u32 %s112, 1
          %s283 = scalar_lea.sflag [#allocation4], %s282
          %s284 = sand.u32 %s112, 1
          %s285 = scalar_lea.vmem [#allocation7], %s284
          %287 = dma.done %s283, 16
        $region52: #{tpu_custom_call.1} parent=47 // pred_fallthru
          _
      $region48: #{tpu_custom_call.1} parent=5 // pred_fallthru
        _
    $region6: #{tpu_custom_call.1} parent=1 // loop_footer
      %s21 = sadd.s32 1, %s17
    $region7: #{tpu_custom_call.1} parent=1 // loop_footer_branch
      %16 = sbr.rel target = $region3
    $region8: #{tpu_custom_call.1} parent=1 // loop_exit
      _
    %288 = vsyncpa [#allocation3], 1
    %s289 = scalar_lea.sflag [#allocation3], 1
    %290 = vsyncpa %s289, 1
    %291 = vsyncpa [#allocation6], 1
    %s292 = scalar_lea.sflag [#allocation6], 1
    %293 = vsyncpa %s292, 1
    %294 = vsyncpa [#allocation4], 1
    %s295 = scalar_lea.sflag [#allocation4], 1
    %296 = vsyncpa %s295, 1

</llo_original>
